<compile_context>
chip_gen: v7x
topology: tpu7x:2x2x1
jax: 0.10.0
libtpu: 0.0.40
codegen_flags: <defaults>
</compile_context>

<pallas_src>
import functools

import jax
import jax.numpy as jnp
import numpy as np
from jax.experimental import pallas as pl
from jax.experimental.pallas import tpu as pltpu


def inception_kernel(x_ref, w_in_ref, b_in_ref, w3s_ref, b3_ref, w5s_ref,
                     b5_ref, wp_ref, bp_ref, gamma_ref, beta_ref, mask_ref,
                     out_ref, *, n_filt, n_real, lanes):
    """Everything lives in VMEM. Lane axis = batch*length, padded to `lanes`.

    mask_ref: (5, 1, lanes) f32; mask_ref[s+2] is 1.0 where the lane is a real
    (non-padded) position AND its within-sequence neighbour at offset s
    (s in -2..2) is inside [0, L). mask_ref[2] is the "real lane" mask.
    """
    f = n_filt

    def mm(a, b):
        return jnp.dot(a, b, preferred_element_type=jnp.float32)

    def relu(v):
        return jnp.maximum(v, 0.0)

    def shift(h, s):
        # shifted[:, l] == h[:, l + s]; wrap-around is killed by the masks.
        if s == 0:
            return h
        return pltpu.roll(h, shift=(-s) % lanes, axis=1)

    def shift_zero(h, s):
        # conv-style zero padding at sequence/batch boundaries.
        return shift(h, s) * mask_ref[s + 2]

    x = x_ref[...]                                            # (Cp, lanes)

    # Stacked input-side 1x1 convs: rows [0:F)=path1, [F:2F)=hidden for the
    # 3-tap conv, [2F:3F)=hidden for the 5-tap conv.
    h_all = relu(mm(w_in_ref[...], x) + b_in_ref[...])        # (3F, lanes)
    p1 = h_all[0:f]
    h2 = h_all[f:2 * f]
    h3 = h_all[2 * f:3 * f]

    # path 2: 3-tap conv (padding=1) as ONE matmul vs stacked rolled copies.
    h2_stack = jnp.concatenate([shift_zero(h2, s) for s in (-1, 0, 1)], axis=0)
    p2 = relu(mm(w3s_ref[...], h2_stack) + b3_ref[...])

    # path 3: 5-tap conv (padding=2).
    h3_stack = jnp.concatenate(
        [shift_zero(h3, s) for s in (-2, -1, 0, 1, 2)], axis=0)
    p3 = relu(mm(w5s_ref[...], h3_stack) + b5_ref[...])

    # path 4: maxpool(k=3, stride=1, pad=1) -> 1x1 conv. Boundaries are -inf;
    # the finite centre value keeps every lane finite (no NaN/inf leaks).
    def pool_neighbour(s):
        return jnp.where(mask_ref[s + 2] != 0.0, shift(x, s), -jnp.inf)

    xm = jnp.maximum(jnp.maximum(pool_neighbour(-1), x), pool_neighbour(1))
    p4 = relu(mm(wp_ref[...], xm) + bp_ref[...])

    y = jnp.concatenate([p1, p2, p3, p4], axis=0)             # (4F, lanes)

    # BatchNorm1d, training-mode batch statistics over the n_real real lanes
    # (== over (N, L) per channel), computed in-register; one dense store.
    mreal = mask_ref[2]                                       # (1, lanes)
    inv_cnt = jnp.float32(1.0 / n_real)
    mean = jnp.sum(y * mreal, axis=1, keepdims=True) * inv_cnt
    centered = y - mean
    var = jnp.sum((centered * mreal) ** 2, axis=1, keepdims=True) * inv_cnt
    inv_std = jax.lax.rsqrt(var + 1e-5)
    out_ref[...] = centered * inv_std * gamma_ref[...] + beta_ref[...]


def _boundary_masks(n, seg_len, lanes):
    """(5, 1, lanes) f32: mask[s+2, 0, l] == 1 iff lane l is a real position and
    its within-sequence neighbour at offset s (s in -2..2) exists."""
    lane = jnp.arange(lanes)
    real = lane < n * seg_len
    within = lane % seg_len
    rows = []
    for s in (-2, -1, 0, 1, 2):
        ok = real & (within + s >= 0) & (within + s < seg_len)
        rows.append(jnp.where(ok, 1.0, 0.0).astype(jnp.float32))
    return jnp.stack(rows, axis=0)[:, None, :]


@functools.partial(jax.jit, static_argnames=("filters",))
def inception_block(x, params, filters):
    n, c, seg_len = x.shape
    n_real = n * seg_len
    lanes = max(128, ((n_real + 127) // 128) * 128)   # lane-dense layout
    c_pad = ((c + 7) // 8) * 8                        # sublane-aligned channels

    # (N, C, L) -> (C, N*L), zero-padded to (c_pad, lanes). Lane = n*L + l.
    xf = x.transpose(1, 0, 2).reshape(c, n_real)
    xf = jnp.pad(xf, ((0, c_pad - c), (0, lanes - n_real)))

    pad_c = lambda w: jnp.pad(w, ((0, 0), (0, c_pad - c)))
    w_in = pad_c(jnp.concatenate([params["w1"], params["w13"], params["w15"]], 0))
    b_in = jnp.concatenate([params["b1"], params["b13"], params["b15"]], 0)
    w3s = jnp.concatenate([params["w3"][k] for k in range(3)], axis=1)  # (F,3F)
    w5s = jnp.concatenate([params["w5"][k] for k in range(5)], axis=1)  # (F,5F)
    wp = pad_c(params["wp"])

    masks = _boundary_masks(n, seg_len, lanes)

    kern = functools.partial(inception_kernel, n_filt=filters,
                             n_real=n_real, lanes=lanes)
    vmem = pl.BlockSpec(memory_space=pltpu.MemorySpace.VMEM)
    out = pl.pallas_call(
        kern,
        out_shape=jax.ShapeDtypeStruct((4 * filters, lanes), jnp.float32),
        in_specs=[vmem] * 12,
        out_specs=vmem,
    )(xf, w_in, b_in, w3s, params["b3"], w5s, params["b5"], wp, params["bp"],
      params["gamma"], params["beta"], masks)

    # (4F, lanes) -> (N, 4F, L)
    return out[:, :n_real].reshape(4 * filters, n, seg_len).transpose(1, 0, 2)


def init_params(key, filters, in_ch):
    """Deterministic PyTorch-style uniform init. Conv weights with kernel size K
    are stored as (K, F_out, F_in) so w[k] is the k-th tap matrix."""
    def uni(k, shape, fan_in):
        bound = 1.0 / (fan_in ** 0.5)
        return jax.random.uniform(k, shape, jnp.float32, -bound, bound)

    f, c = filters, in_ch
    ks = jax.random.split(key, 12)
    return dict(
        w1=uni(ks[0], (f, c), c),          b1=uni(ks[1], (f, 1), c),
        w13=uni(ks[2], (f, c), c),         b13=uni(ks[3], (f, 1), c),
        w3=uni(ks[4], (3, f, f), 3 * f),   b3=uni(ks[5], (f, 1), 3 * f),
        w15=uni(ks[6], (f, c), c),         b15=uni(ks[7], (f, 1), c),
        w5=uni(ks[8], (5, f, f), 5 * f),   b5=uni(ks[9], (f, 1), 5 * f),
        wp=uni(ks[10], (f, c), c),         bp=uni(ks[11], (f, 1), c),
        gamma=jnp.ones((4 * f, 1), jnp.float32),
        beta=jnp.zeros((4 * f, 1), jnp.float32),
    )


def reference(x, params):
    """Pure-JAX reference mirroring the PyTorch forward."""
    relu = lambda v: jnp.maximum(v, 0.0)

    def conv1x1(h, w, b):
        return jnp.einsum('fc,ncl->nfl', w, h) + b[None, :, :]

    def convk(h, wk, b, pad):
        k_taps, seq = wk.shape[0], h.shape[-1]
        hp = jnp.pad(h, ((0, 0), (0, 0), (pad, pad)))
        out = b[None, :, :]
        for k in range(k_taps):
            out = out + jnp.einsum('fc,ncl->nfl', wk[k], hp[:, :, k:k + seq])
        return out

    p1 = relu(conv1x1(x, params["w1"], params["b1"]))
    p2 = relu(convk(relu(conv1x1(x, params["w13"], params["b13"])),
                    params["w3"], params["b3"], 1))
    p3 = relu(convk(relu(conv1x1(x, params["w15"], params["b15"])),
                    params["w5"], params["b5"], 2))
    seq = x.shape[-1]
    xp = jnp.pad(x, ((0, 0), (0, 0), (1, 1)), constant_values=-jnp.inf)
    xm = jnp.maximum(jnp.maximum(xp[:, :, 0:seq], xp[:, :, 1:seq + 1]),
                     xp[:, :, 2:seq + 2])
    p4 = relu(conv1x1(xm, params["wp"], params["bp"]))
    y = jnp.concatenate([p1, p2, p3, p4], axis=1)
    mean = jnp.mean(y, axis=(0, 2), keepdims=True)
    var = jnp.mean((y - mean) ** 2, axis=(0, 2), keepdims=True)
    yh = (y - mean) * jax.lax.rsqrt(var + 1e-5)
    return yh * params["gamma"][None] + params["beta"][None]


if __name__ == "__main__":
    N, C, L, F = 2, 21, 16, 8  # batch, in_channels (module default 21), length, filters
    key = jax.random.PRNGKey(0)
    k_x, k_p = jax.random.split(key)
    x = jax.random.normal(k_x, (N, C, L), jnp.float32)
    params = init_params(k_p, F, C)

    out = inception_block(x, params, F)
    out = jax.block_until_ready(out)
    assert out.shape == (N, 4 * F, L)

    ref = reference(x, params)
    np.testing.assert_allclose(np.asarray(out), np.asarray(ref),
                               atol=3e-2, rtol=3e-2)
    print("KERNEL_OK")
</pallas_src>

<mosaic_0001>
module attributes {stable_mosaic.version = 11 : i64} {
  func.func @inception_kernel(%arg0: memref<24x128xf32, #tpu.memory_space<vmem>>, %arg1: memref<24x24xf32, #tpu.memory_space<vmem>>, %arg2: memref<24x1xf32, #tpu.memory_space<vmem>>, %arg3: memref<8x24xf32, #tpu.memory_space<vmem>>, %arg4: memref<8x1xf32, #tpu.memory_space<vmem>>, %arg5: memref<8x40xf32, #tpu.memory_space<vmem>>, %arg6: memref<8x1xf32, #tpu.memory_space<vmem>>, %arg7: memref<8x24xf32, #tpu.memory_space<vmem>>, %arg8: memref<8x1xf32, #tpu.memory_space<vmem>>, %arg9: memref<32x1xf32, #tpu.memory_space<vmem>>, %arg10: memref<32x1xf32, #tpu.memory_space<vmem>>, %arg11: memref<5x1x128xf32, #tpu.memory_space<vmem>>, %arg12: memref<32x128xf32, #tpu.memory_space<vmem>>) attributes {dimension_semantics = [], scalar_prefetch = 0 : i64, scratch_operands = 0 : i64, tpu.core_type = #tpu.core_type<tc>} {
    %c0 = arith.constant 0 : index
    %c0_0 = arith.constant 0 : index
    %0 = vector.load %arg0[%c0, %c0_0] : memref<24x128xf32, #tpu.memory_space<vmem>>, vector<24x128xf32>
    %c0_1 = arith.constant 0 : index
    %c0_2 = arith.constant 0 : index
    %1 = vector.load %arg1[%c0_1, %c0_2] : memref<24x24xf32, #tpu.memory_space<vmem>>, vector<24x24xf32>
    %cst = arith.constant dense<0.000000e+00> : vector<24x128xf32>
    %2 = tpu.matmul %1, %0, %cst {dimension_numbers = #tpu.dot_dimension_numbers<[1], [0], [0], [1], [0, 0, 1, 1], [], []>} : vector<24x24xf32>, vector<24x128xf32>, vector<24x128xf32> -> vector<24x128xf32>
    %c0_3 = arith.constant 0 : index
    %c0_4 = arith.constant 0 : index
    %3 = vector.load %arg2[%c0_3, %c0_4] : memref<24x1xf32, #tpu.memory_space<vmem>>, vector<24x1xf32>
    %4 = vector.broadcast %3 : vector<24x1xf32> to vector<24x128xf32>
    %5 = arith.addf %2, %4 : vector<24x128xf32>
    %cst_5 = arith.constant 0.000000e+00 : f32
    %6 = vector.broadcast %cst_5 : f32 to vector<24x128xf32>
    %7 = arith.maximumf %5, %6 : vector<24x128xf32>
    %8 = vector.extract_strided_slice %7 {offsets = [0, 0], sizes = [8, 128], strides = [1, 1]} : vector<24x128xf32> to vector<8x128xf32>
    %9 = vector.extract_strided_slice %7 {offsets = [8, 0], sizes = [8, 128], strides = [1, 1]} : vector<24x128xf32> to vector<8x128xf32>
    %10 = vector.extract_strided_slice %7 {offsets = [16, 0], sizes = [8, 128], strides = [1, 1]} : vector<24x128xf32> to vector<8x128xf32>
    %c1_i32 = arith.constant 1 : i32
    %11 = tpu.dynamic_rotate %9 by %c1_i32 dim 1 : vector<8x128xf32>, i32 -> vector<8x128xf32>
    %c1 = arith.constant 1 : index
    %c0_6 = arith.constant 0 : index
    %c0_7 = arith.constant 0 : index
    %12 = vector.load %arg11[%c1, %c0_6, %c0_7] : memref<5x1x128xf32, #tpu.memory_space<vmem>>, vector<1x1x128xf32>
    %13 = vector.shape_cast %12 : vector<1x1x128xf32> to vector<1x128xf32>
    %14 = vector.broadcast %13 : vector<1x128xf32> to vector<8x128xf32>
    %15 = arith.mulf %11, %14 : vector<8x128xf32>
    %c2 = arith.constant 2 : index
    %c0_8 = arith.constant 0 : index
    %c0_9 = arith.constant 0 : index
    %16 = vector.load %arg11[%c2, %c0_8, %c0_9] : memref<5x1x128xf32, #tpu.memory_space<vmem>>, vector<1x1x128xf32>
    %17 = vector.shape_cast %16 : vector<1x1x128xf32> to vector<1x128xf32>
    %18 = vector.broadcast %17 : vector<1x128xf32> to vector<8x128xf32>
    %19 = arith.mulf %9, %18 : vector<8x128xf32>
    %c127_i32 = arith.constant 127 : i32
    %20 = tpu.dynamic_rotate %9 by %c127_i32 dim 1 : vector<8x128xf32>, i32 -> vector<8x128xf32>
    %c3 = arith.constant 3 : index
    %c0_10 = arith.constant 0 : index
    %c0_11 = arith.constant 0 : index
    %21 = vector.load %arg11[%c3, %c0_10, %c0_11] : memref<5x1x128xf32, #tpu.memory_space<vmem>>, vector<1x1x128xf32>
    %22 = vector.shape_cast %21 : vector<1x1x128xf32> to vector<1x128xf32>
    %23 = vector.broadcast %22 : vector<1x128xf32> to vector<8x128xf32>
    %24 = arith.mulf %20, %23 : vector<8x128xf32>
    %25 = tpu.concatenate %15, %19, %24 in 0 : vector<8x128xf32>, vector<8x128xf32>, vector<8x128xf32> -> vector<24x128xf32>
    %c0_12 = arith.constant 0 : index
    %c0_13 = arith.constant 0 : index
    %26 = vector.load %arg3[%c0_12, %c0_13] : memref<8x24xf32, #tpu.memory_space<vmem>>, vector<8x24xf32>
    %cst_14 = arith.constant dense<0.000000e+00> : vector<8x128xf32>
    %27 = tpu.matmul %26, %25, %cst_14 {dimension_numbers = #tpu.dot_dimension_numbers<[1], [0], [0], [1], [0, 0, 1, 1], [], []>} : vector<8x24xf32>, vector<24x128xf32>, vector<8x128xf32> -> vector<8x128xf32>
    %c0_15 = arith.constant 0 : index
    %c0_16 = arith.constant 0 : index
    %28 = vector.load %arg4[%c0_15, %c0_16] : memref<8x1xf32, #tpu.memory_space<vmem>>, vector<8x1xf32>
    %29 = vector.broadcast %28 : vector<8x1xf32> to vector<8x128xf32>
    %30 = arith.addf %27, %29 : vector<8x128xf32>
    %cst_17 = arith.constant 0.000000e+00 : f32
    %31 = vector.broadcast %cst_17 : f32 to vector<8x128xf32>
    %32 = arith.maximumf %30, %31 : vector<8x128xf32>
    %c2_i32 = arith.constant 2 : i32
    %33 = tpu.dynamic_rotate %10 by %c2_i32 dim 1 : vector<8x128xf32>, i32 -> vector<8x128xf32>
    %c0_18 = arith.constant 0 : index
    %c0_19 = arith.constant 0 : index
    %c0_20 = arith.constant 0 : index
    %34 = vector.load %arg11[%c0_18, %c0_19, %c0_20] : memref<5x1x128xf32, #tpu.memory_space<vmem>>, vector<1x1x128xf32>
    %35 = vector.shape_cast %34 : vector<1x1x128xf32> to vector<1x128xf32>
    %36 = vector.broadcast %35 : vector<1x128xf32> to vector<8x128xf32>
    %37 = arith.mulf %33, %36 : vector<8x128xf32>
    %c1_i32_21 = arith.constant 1 : i32
    %38 = tpu.dynamic_rotate %10 by %c1_i32_21 dim 1 : vector<8x128xf32>, i32 -> vector<8x128xf32>
    %c1_22 = arith.constant 1 : index
    %c0_23 = arith.constant 0 : index
    %c0_24 = arith.constant 0 : index
    %39 = vector.load %arg11[%c1_22, %c0_23, %c0_24] : memref<5x1x128xf32, #tpu.memory_space<vmem>>, vector<1x1x128xf32>
    %40 = vector.shape_cast %39 : vector<1x1x128xf32> to vector<1x128xf32>
    %41 = vector.broadcast %40 : vector<1x128xf32> to vector<8x128xf32>
    %42 = arith.mulf %38, %41 : vector<8x128xf32>
    %c2_25 = arith.constant 2 : index
    %c0_26 = arith.constant 0 : index
    %c0_27 = arith.constant 0 : index
    %43 = vector.load %arg11[%c2_25, %c0_26, %c0_27] : memref<5x1x128xf32, #tpu.memory_space<vmem>>, vector<1x1x128xf32>
    %44 = vector.shape_cast %43 : vector<1x1x128xf32> to vector<1x128xf32>
    %45 = vector.broadcast %44 : vector<1x128xf32> to vector<8x128xf32>
    %46 = arith.mulf %10, %45 : vector<8x128xf32>
    %c127_i32_28 = arith.constant 127 : i32
    %47 = tpu.dynamic_rotate %10 by %c127_i32_28 dim 1 : vector<8x128xf32>, i32 -> vector<8x128xf32>
    %c3_29 = arith.constant 3 : index
    %c0_30 = arith.constant 0 : index
    %c0_31 = arith.constant 0 : index
    %48 = vector.load %arg11[%c3_29, %c0_30, %c0_31] : memref<5x1x128xf32, #tpu.memory_space<vmem>>, vector<1x1x128xf32>
    %49 = vector.shape_cast %48 : vector<1x1x128xf32> to vector<1x128xf32>
    %50 = vector.broadcast %49 : vector<1x128xf32> to vector<8x128xf32>
    %51 = arith.mulf %47, %50 : vector<8x128xf32>
    %c126_i32 = arith.constant 126 : i32
    %52 = tpu.dynamic_rotate %10 by %c126_i32 dim 1 : vector<8x128xf32>, i32 -> vector<8x128xf32>
    %c4 = arith.constant 4 : index
    %c0_32 = arith.constant 0 : index
    %c0_33 = arith.constant 0 : index
    %53 = vector.load %arg11[%c4, %c0_32, %c0_33] : memref<5x1x128xf32, #tpu.memory_space<vmem>>, vector<1x1x128xf32>
    %54 = vector.shape_cast %53 : vector<1x1x128xf32> to vector<1x128xf32>
    %55 = vector.broadcast %54 : vector<1x128xf32> to vector<8x128xf32>
    %56 = arith.mulf %52, %55 : vector<8x128xf32>
    %57 = tpu.concatenate %37, %42, %46, %51, %56 in 0 : vector<8x128xf32>, vector<8x128xf32>, vector<8x128xf32>, vector<8x128xf32>, vector<8x128xf32> -> vector<40x128xf32>
    %c0_34 = arith.constant 0 : index
    %c0_35 = arith.constant 0 : index
    %58 = vector.load %arg5[%c0_34, %c0_35] : memref<8x40xf32, #tpu.memory_space<vmem>>, vector<8x40xf32>
    %cst_36 = arith.constant dense<0.000000e+00> : vector<8x128xf32>
    %59 = tpu.matmul %58, %57, %cst_36 {dimension_numbers = #tpu.dot_dimension_numbers<[1], [0], [0], [1], [0, 0, 1, 1], [], []>} : vector<8x40xf32>, vector<40x128xf32>, vector<8x128xf32> -> vector<8x128xf32>
    %c0_37 = arith.constant 0 : index
    %c0_38 = arith.constant 0 : index
    %60 = vector.load %arg6[%c0_37, %c0_38] : memref<8x1xf32, #tpu.memory_space<vmem>>, vector<8x1xf32>
    %61 = vector.broadcast %60 : vector<8x1xf32> to vector<8x128xf32>
    %62 = arith.addf %59, %61 : vector<8x128xf32>
    %cst_39 = arith.constant 0.000000e+00 : f32
    %63 = vector.broadcast %cst_39 : f32 to vector<8x128xf32>
    %64 = arith.maximumf %62, %63 : vector<8x128xf32>
    %c1_40 = arith.constant 1 : index
    %c0_41 = arith.constant 0 : index
    %c0_42 = arith.constant 0 : index
    %65 = vector.load %arg11[%c1_40, %c0_41, %c0_42] : memref<5x1x128xf32, #tpu.memory_space<vmem>>, vector<1x1x128xf32>
    %66 = vector.shape_cast %65 : vector<1x1x128xf32> to vector<1x128xf32>
    %cst_43 = arith.constant 0.000000e+00 : f32
    %67 = vector.broadcast %cst_43 : f32 to vector<1x128xf32>
    %68 = arith.cmpf one, %66, %67 : vector<1x128xf32>
    %c1_i32_44 = arith.constant 1 : i32
    %69 = tpu.dynamic_rotate %0 by %c1_i32_44 dim 1 : vector<24x128xf32>, i32 -> vector<24x128xf32>
    %cst_45 = arith.constant 0xFF800000 : f32
    %70 = vector.shape_cast %68 : vector<1x128xi1> to vector<1x128xi1>
    %71 = vector.broadcast %70 : vector<1x128xi1> to vector<24x128xi1>
    %72 = vector.broadcast %cst_45 : f32 to vector<24x128xf32>
    %73 = arith.select %71, %69, %72 : vector<24x128xi1>, vector<24x128xf32>
    %74 = arith.maximumf %73, %0 : vector<24x128xf32>
    %c3_46 = arith.constant 3 : index
    %c0_47 = arith.constant 0 : index
    %c0_48 = arith.constant 0 : index
    %75 = vector.load %arg11[%c3_46, %c0_47, %c0_48] : memref<5x1x128xf32, #tpu.memory_space<vmem>>, vector<1x1x128xf32>
    %76 = vector.shape_cast %75 : vector<1x1x128xf32> to vector<1x128xf32>
    %cst_49 = arith.constant 0.000000e+00 : f32
    %77 = vector.broadcast %cst_49 : f32 to vector<1x128xf32>
    %78 = arith.cmpf one, %76, %77 : vector<1x128xf32>
    %c127_i32_50 = arith.constant 127 : i32
    %79 = tpu.dynamic_rotate %0 by %c127_i32_50 dim 1 : vector<24x128xf32>, i32 -> vector<24x128xf32>
    %cst_51 = arith.constant 0xFF800000 : f32
    %80 = vector.shape_cast %78 : vector<1x128xi1> to vector<1x128xi1>
    %81 = vector.broadcast %80 : vector<1x128xi1> to vector<24x128xi1>
    %82 = vector.broadcast %cst_51 : f32 to vector<24x128xf32>
    %83 = arith.select %81, %79, %82 : vector<24x128xi1>, vector<24x128xf32>
    %84 = arith.maximumf %74, %83 : vector<24x128xf32>
    %c0_52 = arith.constant 0 : index
    %c0_53 = arith.constant 0 : index
    %85 = vector.load %arg7[%c0_52, %c0_53] : memref<8x24xf32, #tpu.memory_space<vmem>>, vector<8x24xf32>
    %cst_54 = arith.constant dense<0.000000e+00> : vector<8x128xf32>
    %86 = tpu.matmul %85, %84, %cst_54 {dimension_numbers = #tpu.dot_dimension_numbers<[1], [0], [0], [1], [0, 0, 1, 1], [], []>} : vector<8x24xf32>, vector<24x128xf32>, vector<8x128xf32> -> vector<8x128xf32>
    %c0_55 = arith.constant 0 : index
    %c0_56 = arith.constant 0 : index
    %87 = vector.load %arg8[%c0_55, %c0_56] : memref<8x1xf32, #tpu.memory_space<vmem>>, vector<8x1xf32>
    %88 = vector.broadcast %87 : vector<8x1xf32> to vector<8x128xf32>
    %89 = arith.addf %86, %88 : vector<8x128xf32>
    %cst_57 = arith.constant 0.000000e+00 : f32
    %90 = vector.broadcast %cst_57 : f32 to vector<8x128xf32>
    %91 = arith.maximumf %89, %90 : vector<8x128xf32>
    %92 = tpu.concatenate %8, %32, %64, %91 in 0 : vector<8x128xf32>, vector<8x128xf32>, vector<8x128xf32>, vector<8x128xf32> -> vector<32x128xf32>
    %c2_58 = arith.constant 2 : index
    %c0_59 = arith.constant 0 : index
    %c0_60 = arith.constant 0 : index
    %93 = vector.load %arg11[%c2_58, %c0_59, %c0_60] : memref<5x1x128xf32, #tpu.memory_space<vmem>>, vector<1x1x128xf32>
    %94 = vector.shape_cast %93 : vector<1x1x128xf32> to vector<1x128xf32>
    %95 = vector.broadcast %94 : vector<1x128xf32> to vector<32x128xf32>
    %96 = arith.mulf %92, %95 : vector<32x128xf32>
    %cst_61 = arith.constant dense<0.000000e+00> : vector<32xf32>
    %97 = vector.multi_reduction <add>, %96, %cst_61 [1] : vector<32x128xf32> to vector<32xf32>
    %98 = vector.shape_cast %97 : vector<32xf32> to vector<32x1xf32>
    %cst_62 = arith.constant 3.125000e-02 : f32
    %99 = vector.broadcast %cst_62 : f32 to vector<32x1xf32>
    %100 = arith.mulf %98, %99 : vector<32x1xf32>
    %101 = vector.broadcast %100 : vector<32x1xf32> to vector<32x128xf32>
    %102 = arith.subf %92, %101 : vector<32x128xf32>
    %103 = vector.broadcast %94 : vector<1x128xf32> to vector<32x128xf32>
    %104 = arith.mulf %102, %103 : vector<32x128xf32>
    %105 = arith.mulf %104, %104 : vector<32x128xf32>
    %cst_63 = arith.constant dense<0.000000e+00> : vector<32xf32>
    %106 = vector.multi_reduction <add>, %105, %cst_63 [1] : vector<32x128xf32> to vector<32xf32>
    %107 = vector.shape_cast %106 : vector<32xf32> to vector<32x1xf32>
    %cst_64 = arith.constant 3.125000e-02 : f32
    %108 = vector.broadcast %cst_64 : f32 to vector<32x1xf32>
    %109 = arith.mulf %107, %108 : vector<32x1xf32>
    %cst_65 = arith.constant 9.99999974E-6 : f32
    %110 = vector.broadcast %cst_65 : f32 to vector<32x1xf32>
    %111 = arith.addf %109, %110 : vector<32x1xf32>
    %112 = math.rsqrt %111 : vector<32x1xf32>
    %113 = vector.broadcast %112 : vector<32x1xf32> to vector<32x128xf32>
    %114 = arith.mulf %102, %113 : vector<32x128xf32>
    %c0_66 = arith.constant 0 : index
    %c0_67 = arith.constant 0 : index
    %115 = vector.load %arg9[%c0_66, %c0_67] : memref<32x1xf32, #tpu.memory_space<vmem>>, vector<32x1xf32>
    %116 = vector.broadcast %115 : vector<32x1xf32> to vector<32x128xf32>
    %117 = arith.mulf %114, %116 : vector<32x128xf32>
    %c0_68 = arith.constant 0 : index
    %c0_69 = arith.constant 0 : index
    %118 = vector.load %arg10[%c0_68, %c0_69] : memref<32x1xf32, #tpu.memory_space<vmem>>, vector<32x1xf32>
    %119 = vector.broadcast %118 : vector<32x1xf32> to vector<32x128xf32>
    %120 = arith.addf %117, %119 : vector<32x128xf32>
    %c0_70 = arith.constant 0 : index
    %c0_71 = arith.constant 0 : index
    %121 = vector.load %arg12[%c0_70, %c0_71] : memref<32x128xf32, #tpu.memory_space<vmem>>, vector<32x128xf32>
    tpu.vector_store %arg12[%c0_70, %c0_71], %120 {strides = array<i32>} : memref<32x128xf32, #tpu.memory_space<vmem>>, vector<32x128xf32>,
    return
  }
}

</mosaic_0001>

<llo_original>
// kernel: inception_block.1
$region0: #{inception_block.1}
  #allocation0 [shape = 'u32[]', space=smem, size = 0x4, offset = 0x4, fixed_abs, tag = 'smem constant byte address 0x4 - core index']
  #allocation1 [shape = 'u32[144,128]{1,0:T(1,128)}', space=vmem, size = 0x12000, scoped, tag = 'internal scratch']
  %s0 = inlined_call_operand.vmem [shape: f32[24,128], index: 0, kind: input, shape index: {}]
  %s1 = inlined_call_operand.vmem [shape: f32[24,24], index: 1, kind: input, shape index: {}]
  %s2 = inlined_call_operand.vmem [shape: f32[24,1], index: 2, kind: input, shape index: {}]
  %s3 = inlined_call_operand.vmem [shape: f32[8,24], index: 3, kind: input, shape index: {}]
  %s4 = inlined_call_operand.vmem [shape: f32[8,1], index: 4, kind: input, shape index: {}]
  %s5 = inlined_call_operand.vmem [shape: f32[8,40], index: 5, kind: input, shape index: {}]
  %s6 = inlined_call_operand.vmem [shape: f32[8,1], index: 6, kind: input, shape index: {}]
  %s7 = inlined_call_operand.vmem [shape: f32[8,24], index: 7, kind: input, shape index: {}]
  %s8 = inlined_call_operand.vmem [shape: f32[8,1], index: 8, kind: input, shape index: {}]
  %s9 = inlined_call_operand.vmem [shape: f32[32,1], index: 9, kind: input, shape index: {}]
  %s10 = inlined_call_operand.vmem [shape: f32[32,1], index: 10, kind: input, shape index: {}]
  %s11 = inlined_call_operand.vmem [shape: f32[5,1,128], index: 11, kind: input, shape index: {}]
  %s12 = inlined_call_operand.vmem [shape: f32[32,128], index: 12, kind: output, shape index: {}]
  %s13 = sld [smem:[#allocation0]]
  $region58: #{inception_block.1} parent=0
    _
  %s15 = ssub.s32 1, %s13
  %s16 = scalar_select 0, %s15, %s13
  // Predicated region
  $region2: #{inception_block.1} parent=0 // pred_check
    _
  $region3: #{inception_block.1} parent=0 // pred_check_branch
    %18 = sbr.rel (0) target = $region5
  $region4: #{inception_block.1} parent=0 // pred_region
    _
  $region5: #{inception_block.1} parent=0 // pred_fallthru
    _
  // Predicated region
  $region6: #{inception_block.1} parent=0 // pred_check
    _
  $region7: #{inception_block.1} parent=0 // pred_check_branch
    %20 = sbr.rel (0) target = $region9
  $region8: #{inception_block.1} parent=0 // pred_region
    _
  $region9: #{inception_block.1} parent=0 // pred_fallthru
    _
  // Predicated region
  $region10: #{inception_block.1} parent=0 // pred_check
    _
  $region11: #{inception_block.1} parent=0 // pred_check_branch
    %22 = sbr.rel (0) target = $region13
  $region12: #{inception_block.1} parent=0 // pred_region
    _
  $region13: #{inception_block.1} parent=0 // pred_fallthru
    _
  // Predicated region
  $region14: #{inception_block.1} parent=0 // pred_check
    _
  $region15: #{inception_block.1} parent=0 // pred_check_branch
    %24 = sbr.rel (0) target = $region17
  $region16: #{inception_block.1} parent=0 // pred_region
    _
  $region17: #{inception_block.1} parent=0 // pred_fallthru
    _
  // Predicated region
  $region18: #{inception_block.1} parent=0 // pred_check
    _
  $region19: #{inception_block.1} parent=0 // pred_check_branch
    %26 = sbr.rel (0) target = $region21
  $region20: #{inception_block.1} parent=0 // pred_region
    _
  $region21: #{inception_block.1} parent=0 // pred_fallthru
    _
  // Predicated region
  $region22: #{inception_block.1} parent=0 // pred_check
    _
  $region23: #{inception_block.1} parent=0 // pred_check_branch
    %28 = sbr.rel (0) target = $region25
  $region24: #{inception_block.1} parent=0 // pred_region
    _
  $region25: #{inception_block.1} parent=0 // pred_fallthru
    _
  // Predicated region
  $region26: #{inception_block.1} parent=0 // pred_check
    _
  $region27: #{inception_block.1} parent=0 // pred_check_branch
    %30 = sbr.rel (0) target = $region29
  $region28: #{inception_block.1} parent=0 // pred_region
    _
  $region29: #{inception_block.1} parent=0 // pred_fallthru
    _
  // Predicated region
  $region30: #{inception_block.1} parent=0 // pred_check
    _
  $region31: #{inception_block.1} parent=0 // pred_check_branch
    %32 = sbr.rel (0) target = $region33
  $region32: #{inception_block.1} parent=0 // pred_region
    _
  $region33: #{inception_block.1} parent=0 // pred_fallthru
    _
  // Predicated region
  $region34: #{inception_block.1} parent=0 // pred_check
    _
  $region35: #{inception_block.1} parent=0 // pred_check_branch
    %34 = sbr.rel (0) target = $region37
  $region36: #{inception_block.1} parent=0 // pred_region
    _
  $region37: #{inception_block.1} parent=0 // pred_fallthru
    _
  // Predicated region
  $region38: #{inception_block.1} parent=0 // pred_check
    _
  $region39: #{inception_block.1} parent=0 // pred_check_branch
    %36 = sbr.rel (0) target = $region41
  $region40: #{inception_block.1} parent=0 // pred_region
    _
  $region41: #{inception_block.1} parent=0 // pred_fallthru
    _
  // Predicated region
  $region42: #{inception_block.1} parent=0 // pred_check
    _
  $region43: #{inception_block.1} parent=0 // pred_check_branch
    %38 = sbr.rel (0) target = $region45
  $region44: #{inception_block.1} parent=0 // pred_region
    _
  $region45: #{inception_block.1} parent=0 // pred_fallthru
    _
  // Predicated region
  $region46: #{inception_block.1} parent=0 // pred_check
    _
  $region47: #{inception_block.1} parent=0 // pred_check_branch
    %40 = sbr.rel (0) target = $region49
  $region48: #{inception_block.1} parent=0 // pred_region
    _
  $region49: #{inception_block.1} parent=0 // pred_fallthru
    _
  %v41 = vld [vmem:[%s0] sm:$0xff]
  %v42 = vld [vmem:[%s0 + $0x8] sm:$0xff]
  %v43 = vld [vmem:[%s0 + $0x10] sm:$0xff]
  %v44 = vld [vmem:[%s1] sm:$0xff]
  %v45 = vld [vmem:[%s1 + $0x8] sm:$0xff]
  %v46 = vld [vmem:[%s1 + $0x10] sm:$0xff]
  %v47 = vld [vmem:[%s2] sm:$0xff]
  %v48 = vld [vmem:[%s2 + $0x8] sm:$0xff]
  %v49 = vld [vmem:[%s2 + $0x10] sm:$0xff]
  %51 = vset.pattern.permute.xlu0 0
  %52 = vperm.xlu0 %51, %v47
  %v53 = vpop.permute.xlu0 %52
  %56 = vset.pattern.permute.xlu0 0
  %57 = vperm.xlu0 %56, %v48
  %v58 = vpop.permute.xlu0 %57
  %61 = vset.pattern.permute.xlu0 0
  %62 = vperm.xlu0 %61, %v49
  %v63 = vpop.permute.xlu0 %62
  %vm65 = vcmask 195584
  %v67 = vsel %vm65, %v44, 0
  %v70 = vsel %vm65, %v45, 0
  %v73 = vsel %vm65, %v46, 0
  %75 = vmatprep.subr.mxu0 0.0
  %76 = vmatpush1.msra.mxu0 %v41
  %77 = vmatprep.subr.mxu0 0.0
  %78 = vmatpush1.msra.mxu0 %v42
  %79 = vmatprep.subr.mxu0 0.0
  %80 = vmatpush1.msra.mxu0 %v43
  %81 = vmatprep.subr.mxu0 0.0
  %82 = vmatpush1.msra.mxu0 0.0
  %83 = vmatprep.subr.mxu0 0.0
  %84 = vmatpush1.msra.mxu0 0.0
  %85 = vmatprep.subr.mxu0 0.0
  %86 = vmatpush1.msra.mxu0 0.0
  %87 = vmatprep.subr.mxu0 0.0
  %88 = vmatpush1.msra.mxu0 0.0
  %89 = vmatprep.subr.mxu0 0.0
  %90 = vmatpush1.msra.mxu0 0.0
  %91 = vmatprep.subr.mxu0 0.0
  %92 = vmatpush1.msra.mxu0 0.0
  %93 = vmatprep.subr.mxu0 0.0
  %94 = vmatpush1.msra.mxu0 0.0
  %95 = vmatprep.subr.mxu0 0.0
  %96 = vmatpush1.msra.mxu0 0.0
  %97 = vmatprep.subr.mxu0 0.0
  %98 = vmatpush1.msra.mxu0 0.0
  %99 = vmatprep.subr.mxu0 0.0
  %100 = vmatpush1.msra.mxu0 0.0
  %101 = vmatprep.subr.mxu0 0.0
  %102 = vmatpush1.msra.mxu0 0.0
  %103 = vmatprep.subr.mxu0 0.0
  %104 = vmatpush1.msra.mxu0 0.0
  %105 = vmatprep.subr.mxu0 0.0
  %106 = vmatpush1.msra.mxu0 0.0
  %107 = vmatprep.subr.mxu0 0.0
  %108 = vmatpush1.msra.mxu0 0.0
  %109 = vmatprep.subr.mxu0 0.0
  %110 = vmatpush1.msra.mxu0 0.0
  %111 = vmatprep.subr.mxu0 0.0
  %112 = vmatpush1.msra.mxu0 0.0
  %113 = vmatprep.subr.mxu0 0.0
  %114 = vmatpush1.msra.mxu0 0.0
  %115 = vmatprep.subr.mxu0 0.0
  %116 = vmatpush1.msra.mxu0 0.0
  %117 = vmatprep.subr.mxu0 0.0
  %118 = vmatpush1.msra.mxu0 0.0
  %119 = vmatprep.subr.mxu0 0.0
  %120 = vmatpush1.msra.mxu0 0.0
  %121 = vmatprep.subr.mxu0 0.0
  %122 = vmatpush1.msra.mxu0 0.0
  %123 = vmatprep.subr.mxu0 0.0
  %124 = vmatpush1.msra.mxu0 0.0
  %125 = vmatprep.subr.mxu0 0.0
  %126 = vmatpush1.msra.mxu0 0.0
  %127 = vmatprep.subr.mxu0 0.0
  %128 = vmatpush1.msra.mxu0 0.0
  %129 = vmatprep.subr.mxu0 0.0
  %130 = vmatpush1.msra.mxu0 0.0
  %131 = vmatprep.subr.mxu0 0.0
  %132 = vmatpush1.msra.mxu0 0.0
  %133 = vmatprep.subr.mxu0 0.0
  %134 = vmatpush1.msra.mxu0 0.0
  %135 = vmatprep.subr.mxu0 0.0
  %136 = vmatpush1.msra.mxu0 0.0
  %137 = vmatprep.subr.mxu0 0.0
  %138 = vmatpush1.msra.mxu0 0.0
  %139 = vmatprep.mubr.f32.mxu0 0.0
  %140 = vmatmul.mubr.f32.gmra.mrb[0].mxu0 %v67
  %v141 = vpop.f32.mrb[0].mxu0
  %v142 = vadd.f32 %v53, %v141
  %v143 = vpop.f32.mrb[0].mxu0
  %144 = vmatprep.mubr.f32.mxu0 0.0
  %145 = vmatmul.mubr.f32.gmra.mrb[0].mxu0 %v70
  %v146 = vpop.f32.mrb[0].mxu0
  %v147 = vadd.f32 %v58, %v146
  %v148 = vpop.f32.mrb[0].mxu0
  %149 = vmatprep.mubr.f32.mxu0 0.0
  %150 = vmatmul.mubr.f32.gmra.mrb[0].mxu0 %v73
  %v151 = vpop.f32.mrb[0].mxu0
  %v152 = vadd.f32 %v63, %v151
  %v153 = vpop.f32.mrb[0].mxu0
  %154 = vdwg.mxu0
  %v155 = vmax.f32 %v142, 0.0
  %v156 = vmax.f32 %v147, 0.0
  %v157 = vmax.f32 %v152, 0.0
  %158 = vrot.lane.b32.xlu0 %v156, 1
  %v159 = vpop.permute.xlu0 %158
  %s160 = scalar_lea.vmem %s11, 1
  %v161 = vld [vmem:[%s160] sm:$0x1]
  %v163 = vlaneseq
  %v164 = vshrl.u32 %v163, 7
  %v165 = vsub.s32 0, %v164
  %v166 = vrot.slane %v161, %v165
  %v168 = vmul.f32 %v159, %v166
  %s169 = scalar_lea.vmem %s11, 2
  %v170 = vld [vmem:[%s169] sm:$0x1]
  %v172 = vlaneseq
  %v173 = vshrl.u32 %v172, 7
  %v174 = vsub.s32 0, %v173
  %v175 = vrot.slane %v170, %v174
  %v177 = vmul.f32 %v156, %v175
  %178 = vrot.lane.b32.xlu0 %v156, 127
  %v179 = vpop.permute.xlu0 %178
  %s180 = scalar_lea.vmem %s11, 3
  %v181 = vld [vmem:[%s180] sm:$0x1]
  %v183 = vlaneseq
  %v184 = vshrl.u32 %v183, 7
  %v185 = vsub.s32 0, %v184
  %v186 = vrot.slane %v181, %v185
  %v188 = vmul.f32 %v179, %v186
  %v189 = vld [vmem:[%s3] sm:$0xff]
  %v190 = vld [vmem:[%s4] sm:$0xff]
  %192 = vset.pattern.permute.xlu0 0
  %193 = vperm.xlu0 %192, %v190
  %v194 = vpop.permute.xlu0 %193
  %v197 = vsel %vm65, %v189, 0
  %199 = vmatprep.subr.mxu0 0.0
  %200 = vmatpush1.msra.mxu0 %v168
  %201 = vmatprep.subr.mxu0 0.0
  %202 = vmatpush1.msra.mxu0 %v177
  %203 = vmatprep.subr.mxu0 0.0
  %204 = vmatpush1.msra.mxu0 %v188
  %205 = vmatprep.subr.mxu0 0.0
  %206 = vmatpush1.msra.mxu0 0.0
  %207 = vmatprep.subr.mxu0 0.0
  %208 = vmatpush1.msra.mxu0 0.0
  %209 = vmatprep.subr.mxu0 0.0
  %210 = vmatpush1.msra.mxu0 0.0
  %211 = vmatprep.subr.mxu0 0.0
  %212 = vmatpush1.msra.mxu0 0.0
  %213 = vmatprep.subr.mxu0 0.0
  %214 = vmatpush1.msra.mxu0 0.0
  %215 = vmatprep.subr.mxu0 0.0
  %216 = vmatpush1.msra.mxu0 0.0
  %217 = vmatprep.subr.mxu0 0.0
  %218 = vmatpush1.msra.mxu0 0.0
  %219 = vmatprep.subr.mxu0 0.0
  %220 = vmatpush1.msra.mxu0 0.0
  %221 = vmatprep.subr.mxu0 0.0
  %222 = vmatpush1.msra.mxu0 0.0
  %223 = vmatprep.subr.mxu0 0.0
  %224 = vmatpush1.msra.mxu0 0.0
  %225 = vmatprep.subr.mxu0 0.0
  %226 = vmatpush1.msra.mxu0 0.0
  %227 = vmatprep.subr.mxu0 0.0
  %228 = vmatpush1.msra.mxu0 0.0
  %229 = vmatprep.subr.mxu0 0.0
  %230 = vmatpush1.msra.mxu0 0.0
  %231 = vmatprep.subr.mxu0 0.0
  %232 = vmatpush1.msra.mxu0 0.0
  %233 = vmatprep.subr.mxu0 0.0
  %234 = vmatpush1.msra.mxu0 0.0
  %235 = vmatprep.subr.mxu0 0.0
  %236 = vmatpush1.msra.mxu0 0.0
  %237 = vmatprep.subr.mxu0 0.0
  %238 = vmatpush1.msra.mxu0 0.0
  %239 = vmatprep.subr.mxu0 0.0
  %240 = vmatpush1.msra.mxu0 0.0
  %241 = vmatprep.subr.mxu0 0.0
  %242 = vmatpush1.msra.mxu0 0.0
  %243 = vmatprep.subr.mxu0 0.0
  %244 = vmatpush1.msra.mxu0 0.0
  %245 = vmatprep.subr.mxu0 0.0
  %246 = vmatpush1.msra.mxu0 0.0
  %247 = vmatprep.subr.mxu0 0.0
  %248 = vmatpush1.msra.mxu0 0.0
  %249 = vmatprep.subr.mxu0 0.0
  %250 = vmatpush1.msra.mxu0 0.0
  %251 = vmatprep.subr.mxu0 0.0
  %252 = vmatpush1.msra.mxu0 0.0
  %253 = vmatprep.subr.mxu0 0.0
  %254 = vmatpush1.msra.mxu0 0.0
  %255 = vmatprep.subr.mxu0 0.0
  %256 = vmatpush1.msra.mxu0 0.0
  %257 = vmatprep.subr.mxu0 0.0
  %258 = vmatpush1.msra.mxu0 0.0
  %259 = vmatprep.subr.mxu0 0.0
  %260 = vmatpush1.msra.mxu0 0.0
  %261 = vmatprep.subr.mxu0 0.0
  %262 = vmatpush1.msra.mxu0 0.0
  %263 = vmatprep.mubr.f32.mxu0 0.0
  %264 = vmatmul.mubr.f32.gmra.mrb[0].mxu0 %v197
  %v265 = vpop.f32.mrb[0].mxu0
  %v266 = vadd.f32 %v194, %v265
  %v267 = vpop.f32.mrb[0].mxu0
  %268 = vdwg.mxu0
  %v269 = vmax.f32 %v266, 0.0
  %270 = vrot.lane.b32.xlu0 %v157, 2
  %v271 = vpop.permute.xlu0 %270
  %v272 = vld [vmem:[%s11] sm:$0x1]
  %v274 = vlaneseq
  %v275 = vshrl.u32 %v274, 7
  %v276 = vsub.s32 0, %v275
  %v277 = vrot.slane %v272, %v276
  %v279 = vmul.f32 %v271, %v277
  %280 = vrot.lane.b32.xlu0 %v157, 1
  %v281 = vpop.permute.xlu0 %280
  %v282 = vmul.f32 %v281, %v166
  %v283 = vmul.f32 %v157, %v175
  %284 = vrot.lane.b32.xlu0 %v157, 127
  %v285 = vpop.permute.xlu0 %284
  %v286 = vmul.f32 %v285, %v186
  %287 = vrot.lane.b32.xlu0 %v157, 126
  %v288 = vpop.permute.xlu0 %287
  %s289 = scalar_lea.vmem %s11, 4
  %v290 = vld [vmem:[%s289] sm:$0x1]
  %v292 = vlaneseq
  %v293 = vshrl.u32 %v292, 7
  %v294 = vsub.s32 0, %v293
  %v295 = vrot.slane %v290, %v294
  %v297 = vmul.f32 %v288, %v295
  %v298 = vld [vmem:[%s5] sm:$0xff]
  %v299 = vld [vmem:[%s6] sm:$0xff]
  %301 = vset.pattern.permute.xlu0 0
  %302 = vperm.xlu0 %301, %v299
  %v303 = vpop.permute.xlu0 %302
  %vm305 = vcmask 326656
  %v307 = vsel %vm305, %v298, 0
  %309 = vmatprep.subr.mxu0 0.0
  %310 = vmatpush1.msra.mxu0 %v279
  %311 = vmatprep.subr.mxu0 0.0
  %312 = vmatpush1.msra.mxu0 %v282
  %313 = vmatprep.subr.mxu0 0.0
  %314 = vmatpush1.msra.mxu0 %v283
  %315 = vmatprep.subr.mxu0 0.0
  %316 = vmatpush1.msra.mxu0 %v286
  %317 = vmatprep.subr.mxu0 0.0
  %318 = vmatpush1.msra.mxu0 %v297
  %319 = vmatprep.subr.mxu0 0.0
  %320 = vmatpush1.msra.mxu0 0.0
  %321 = vmatprep.subr.mxu0 0.0
  %322 = vmatpush1.msra.mxu0 0.0
  %323 = vmatprep.subr.mxu0 0.0
  %324 = vmatpush1.msra.mxu0 0.0
  %325 = vmatprep.subr.mxu0 0.0
  %326 = vmatpush1.msra.mxu0 0.0
  %327 = vmatprep.subr.mxu0 0.0
  %328 = vmatpush1.msra.mxu0 0.0
  %329 = vmatprep.subr.mxu0 0.0
  %330 = vmatpush1.msra.mxu0 0.0
  %331 = vmatprep.subr.mxu0 0.0
  %332 = vmatpush1.msra.mxu0 0.0
  %333 = vmatprep.subr.mxu0 0.0
  %334 = vmatpush1.msra.mxu0 0.0
  %335 = vmatprep.subr.mxu0 0.0
  %336 = vmatpush1.msra.mxu0 0.0
  %337 = vmatprep.subr.mxu0 0.0
  %338 = vmatpush1.msra.mxu0 0.0
  %339 = vmatprep.subr.mxu0 0.0
  %340 = vmatpush1.msra.mxu0 0.0
  %341 = vmatprep.subr.mxu0 0.0
  %342 = vmatpush1.msra.mxu0 0.0
  %343 = vmatprep.subr.mxu0 0.0
  %344 = vmatpush1.msra.mxu0 0.0
  %345 = vmatprep.subr.mxu0 0.0
  %346 = vmatpush1.msra.mxu0 0.0
  %347 = vmatprep.subr.mxu0 0.0
  %348 = vmatpush1.msra.mxu0 0.0
  %349 = vmatprep.subr.mxu0 0.0
  %350 = vmatpush1.msra.mxu0 0.0
  %351 = vmatprep.subr.mxu0 0.0
  %352 = vmatpush1.msra.mxu0 0.0
  %353 = vmatprep.subr.mxu0 0.0
  %354 = vmatpush1.msra.mxu0 0.0
  %355 = vmatprep.subr.mxu0 0.0
  %356 = vmatpush1.msra.mxu0 0.0
  %357 = vmatprep.subr.mxu0 0.0
  %358 = vmatpush1.msra.mxu0 0.0
  %359 = vmatprep.subr.mxu0 0.0
  %360 = vmatpush1.msra.mxu0 0.0
  %361 = vmatprep.subr.mxu0 0.0
  %362 = vmatpush1.msra.mxu0 0.0
  %363 = vmatprep.subr.mxu0 0.0
  %364 = vmatpush1.msra.mxu0 0.0
  %365 = vmatprep.subr.mxu0 0.0
  %366 = vmatpush1.msra.mxu0 0.0
  %367 = vmatprep.subr.mxu0 0.0
  %368 = vmatpush1.msra.mxu0 0.0
  %369 = vmatprep.subr.mxu0 0.0
  %370 = vmatpush1.msra.mxu0 0.0
  %371 = vmatprep.subr.mxu0 0.0
  %372 = vmatpush1.msra.mxu0 0.0
  %373 = vmatprep.mubr.f32.mxu0 0.0
  %374 = vmatmul.mubr.f32.gmra.mrb[0].mxu0 %v307
  %v375 = vpop.f32.mrb[0].mxu0
  %v376 = vadd.f32 %v303, %v375
  %v377 = vpop.f32.mrb[0].mxu0
  %378 = vdwg.mxu0
  %v379 = vmax.f32 %v376, 0.0
  %vm380 = vcmp.ne.f32.partialorder %v161, 0.0
  %381 = vrot.lane.b32.xlu0 %v41, 1
  %v382 = vpop.permute.xlu0 %381
  %383 = vrot.lane.b32.xlu0 %v42, 1
  %v384 = vpop.permute.xlu0 %383
  %385 = vrot.lane.b32.xlu0 %v43, 1
  %v386 = vpop.permute.xlu0 %385
  %v387 = vsel %vm380, 1, 0
  %v388 = vlaneseq
  %v389 = vshrl.u32 %v388, 7
  %v390 = vsub.s32 0, %v389
  %v391 = vrot.slane %v387, %v390
  %vm392 = vcmp.eq.s32.totalorder %v391, 1
  %v393 = vsel %vm392, %v382, -inf
  %v394 = vsel %vm392, %v384, -inf
  %v395 = vsel %vm392, %v386, -inf
  %v396 = vmax.f32 %v393, %v41
  %v397 = vmax.f32 %v394, %v42
  %v398 = vmax.f32 %v395, %v43
  %vm399 = vcmp.ne.f32.partialorder %v181, 0.0
  %400 = vrot.lane.b32.xlu0 %v41, 127
  %v401 = vpop.permute.xlu0 %400
  %402 = vrot.lane.b32.xlu0 %v42, 127
  %v403 = vpop.permute.xlu0 %402
  %404 = vrot.lane.b32.xlu0 %v43, 127
  %v405 = vpop.permute.xlu0 %404
  %v406 = vsel %vm399, 1, 0
  %v407 = vlaneseq
  %v408 = vshrl.u32 %v407, 7
  %v409 = vsub.s32 0, %v408
  %v410 = vrot.slane %v406, %v409
  %vm411 = vcmp.eq.s32.totalorder %v410, 1
  %v412 = vsel %vm411, %v401, -inf
  %v413 = vsel %vm411, %v403, -inf
  %v414 = vsel %vm411, %v405, -inf
  %v415 = vmax.f32 %v396, %v412
  %v416 = vmax.f32 %v397, %v413
  %v417 = vmax.f32 %v398, %v414
  %v418 = vld [vmem:[%s7] sm:$0xff]
  %v419 = vld [vmem:[%s8] sm:$0xff]
  %421 = vset.pattern.permute.xlu0 0
  %422 = vperm.xlu0 %421, %v419
  %v423 = vpop.permute.xlu0 %422
  %v426 = vsel %vm65, %v418, 0
  %428 = vmatprep.subr.mxu0 0.0
  %429 = vmatpush1.msra.mxu0 %v415
  %430 = vmatprep.subr.mxu0 0.0
  %431 = vmatpush1.msra.mxu0 %v416
  %432 = vmatprep.subr.mxu0 0.0
  %433 = vmatpush1.msra.mxu0 %v417
  %434 = vmatprep.subr.mxu0 0.0
  %435 = vmatpush1.msra.mxu0 0.0
  %436 = vmatprep.subr.mxu0 0.0
  %437 = vmatpush1.msra.mxu0 0.0
  %438 = vmatprep.subr.mxu0 0.0
  %439 = vmatpush1.msra.mxu0 0.0
  %440 = vmatprep.subr.mxu0 0.0
  %441 = vmatpush1.msra.mxu0 0.0
  %442 = vmatprep.subr.mxu0 0.0
  %443 = vmatpush1.msra.mxu0 0.0
  %444 = vmatprep.subr.mxu0 0.0
  %445 = vmatpush1.msra.mxu0 0.0
  %446 = vmatprep.subr.mxu0 0.0
  %447 = vmatpush1.msra.mxu0 0.0
  %448 = vmatprep.subr.mxu0 0.0
  %449 = vmatpush1.msra.mxu0 0.0
  %450 = vmatprep.subr.mxu0 0.0
  %451 = vmatpush1.msra.mxu0 0.0
  %452 = vmatprep.subr.mxu0 0.0
  %453 = vmatpush1.msra.mxu0 0.0
  %454 = vmatprep.subr.mxu0 0.0
  %455 = vmatpush1.msra.mxu0 0.0
  %456 = vmatprep.subr.mxu0 0.0
  %457 = vmatpush1.msra.mxu0 0.0
  %458 = vmatprep.subr.mxu0 0.0
  %459 = vmatpush1.msra.mxu0 0.0
  %460 = vmatprep.subr.mxu0 0.0
  %461 = vmatpush1.msra.mxu0 0.0
  %462 = vmatprep.subr.mxu0 0.0
  %463 = vmatpush1.msra.mxu0 0.0
  %464 = vmatprep.subr.mxu0 0.0
  %465 = vmatpush1.msra.mxu0 0.0
  %466 = vmatprep.subr.mxu0 0.0
  %467 = vmatpush1.msra.mxu0 0.0
  %468 = vmatprep.subr.mxu0 0.0
  %469 = vmatpush1.msra.mxu0 0.0
  %470 = vmatprep.subr.mxu0 0.0
  %471 = vmatpush1.msra.mxu0 0.0
  %472 = vmatprep.subr.mxu0 0.0
  %473 = vmatpush1.msra.mxu0 0.0
  %474 = vmatprep.subr.mxu0 0.0
  %475 = vmatpush1.msra.mxu0 0.0
  %476 = vmatprep.subr.mxu0 0.0
  %477 = vmatpush1.msra.mxu0 0.0
  %478 = vmatprep.subr.mxu0 0.0
  %479 = vmatpush1.msra.mxu0 0.0
  %480 = vmatprep.subr.mxu0 0.0
  %481 = vmatpush1.msra.mxu0 0.0
  %482 = vmatprep.subr.mxu0 0.0
  %483 = vmatpush1.msra.mxu0 0.0
  %484 = vmatprep.subr.mxu0 0.0
  %485 = vmatpush1.msra.mxu0 0.0
  %486 = vmatprep.subr.mxu0 0.0
  %487 = vmatpush1.msra.mxu0 0.0
  %488 = vmatprep.subr.mxu0 0.0
  %489 = vmatpush1.msra.mxu0 0.0
  %490 = vmatprep.subr.mxu0 0.0
  %491 = vmatpush1.msra.mxu0 0.0
  %492 = vmatprep.mubr.f32.mxu0 0.0
  %493 = vmatmul.mubr.f32.gmra.mrb[0].mxu0 %v426
  %v494 = vpop.f32.mrb[0].mxu0
  %v495 = vadd.f32 %v423, %v494
  %v496 = vpop.f32.mrb[0].mxu0
  %497 = vdwg.mxu0
  %v498 = vmax.f32 %v495, 0.0
  %v499 = vmul.f32 %v155, %v175
  %v500 = vmul.f32 %v269, %v175
  %v501 = vmul.f32 %v379, %v175
  %v502 = vmul.f32 %v498, %v175
  %503 = vadd.xlane.f32.xlu0 %v499
  %v504 = vpop.xlane.xlu0 %503
  %505 = vadd.xlane.f32.xlu0 %v500
  %v506 = vpop.xlane.xlu0 %505
  %507 = vadd.xlane.f32.xlu0 %v501
  %v508 = vpop.xlane.xlu0 %507
  %509 = vadd.xlane.f32.xlu0 %v502
  %v510 = vpop.xlane.xlu0 %509
  %v511 = vmul.f32 %v504, 0.03125
  %v512 = vmul.f32 %v506, 0.03125
  %v513 = vmul.f32 %v508, 0.03125
  %v514 = vmul.f32 %v510, 0.03125
  %v515 = vsub.f32 %v155, %v511
  %v516 = vsub.f32 %v269, %v512
  %v517 = vsub.f32 %v379, %v513
  %v518 = vsub.f32 %v498, %v514
  %v519 = vmul.f32 %v515, %v175
  %v520 = vmul.f32 %v516, %v175
  %v521 = vmul.f32 %v517, %v175
  %v522 = vmul.f32 %v518, %v175
  %v523 = vmul.f32 %v519, %v519
  %v524 = vmul.f32 %v520, %v520
  %v525 = vmul.f32 %v521, %v521
  %v526 = vmul.f32 %v522, %v522
  %527 = vadd.xlane.f32.xlu0 %v523
  %v528 = vpop.xlane.xlu0 %527
  %529 = vadd.xlane.f32.xlu0 %v524
  %v530 = vpop.xlane.xlu0 %529
  %531 = vadd.xlane.f32.xlu0 %v525
  %v532 = vpop.xlane.xlu0 %531
  %533 = vadd.xlane.f32.xlu0 %v526
  %v534 = vpop.xlane.xlu0 %533
  %v535 = vmul.f32 %v528, 0.03125
  %v536 = vmul.f32 %v530, 0.03125
  %v537 = vmul.f32 %v532, 0.03125
  %v538 = vmul.f32 %v534, 0.03125
  %v539 = vadd.f32 %v535, 1e-05
  %v540 = vadd.f32 %v536, 1e-05
  %v541 = vadd.f32 %v537, 1e-05
  %v542 = vadd.f32 %v538, 1e-05
  %v543 = vrsqrt.pop %v539
  %v544 = vrsqrt.pop %v540
  %v545 = vrsqrt.pop %v541
  %v546 = vrsqrt.pop %v542
  %v547 = vmul.f32 %v515, %v543
  %v548 = vmul.f32 %v516, %v544
  %v549 = vmul.f32 %v517, %v545
  %v550 = vmul.f32 %v518, %v546
  %v551 = vld [vmem:[%s9] sm:$0xff]
  %v552 = vld [vmem:[%s9 + $0x8] sm:$0xff]
  %v553 = vld [vmem:[%s9 + $0x10] sm:$0xff]
  %v554 = vld [vmem:[%s9 + $0x18] sm:$0xff]
  %556 = vset.pattern.permute.xlu0 0
  %557 = vperm.xlu0 %556, %v551
  %v558 = vpop.permute.xlu0 %557
  %561 = vset.pattern.permute.xlu0 0
  %562 = vperm.xlu0 %561, %v552
  %v563 = vpop.permute.xlu0 %562
  %566 = vset.pattern.permute.xlu0 0
  %567 = vperm.xlu0 %566, %v553
  %v568 = vpop.permute.xlu0 %567
  %571 = vset.pattern.permute.xlu0 0
  %572 = vperm.xlu0 %571, %v554
  %v573 = vpop.permute.xlu0 %572
  %v575 = vmul.f32 %v547, %v558
  %v576 = vmul.f32 %v548, %v563
  %v577 = vmul.f32 %v549, %v568
  %v578 = vmul.f32 %v550, %v573
  %v579 = vld [vmem:[%s10] sm:$0xff]
  %v580 = vld [vmem:[%s10 + $0x8] sm:$0xff]
  %v581 = vld [vmem:[%s10 + $0x10] sm:$0xff]
  %v582 = vld [vmem:[%s10 + $0x18] sm:$0xff]
  %584 = vset.pattern.permute.xlu0 0
  %585 = vperm.xlu0 %584, %v579
  %v586 = vpop.permute.xlu0 %585
  %589 = vset.pattern.permute.xlu0 0
  %590 = vperm.xlu0 %589, %v580
  %v591 = vpop.permute.xlu0 %590
  %594 = vset.pattern.permute.xlu0 0
  %595 = vperm.xlu0 %594, %v581
  %v596 = vpop.permute.xlu0 %595
  %599 = vset.pattern.permute.xlu0 0
  %600 = vperm.xlu0 %599, %v582
  %v601 = vpop.permute.xlu0 %600
  %v603 = vadd.f32 %v575, %v586
  %v604 = vadd.f32 %v576, %v591
  %v605 = vadd.f32 %v577, %v596
  %v606 = vadd.f32 %v578, %v601
  %607 = vst [vmem:[%s12] sm:$0xff] %v603
  %608 = vst [vmem:[%s12 + $0x8] sm:$0xff] %v604
  %609 = vst [vmem:[%s12 + $0x10] sm:$0xff] %v605
  %610 = vst [vmem:[%s12 + $0x18] sm:$0xff] %v606
  // Predicated region
  $region50: #{inception_block.1} parent=0 // pred_check
    _
  $region51: #{inception_block.1} parent=0 // pred_check_branch
    %612 = sbr.rel (0) target = $region53
  $region52: #{inception_block.1} parent=0 // pred_region
    _
  $region53: #{inception_block.1} parent=0 // pred_fallthru
    _
  // Predicated region
  $region54: #{inception_block.1} parent=0 // pred_check
    _
  $region55: #{inception_block.1} parent=0 // pred_check_branch
    %614 = sbr.rel (0) target = $region57
  $region56: #{inception_block.1} parent=0 // pred_region
    _
  $region57: #{inception_block.1} parent=0 // pred_fallthru
    _

</llo_original>
